<compile_context>
chip_gen: v6e
topology: v6e:2x2x1
jax: 0.10.0
libtpu: 0.0.40
codegen_flags: <defaults>
</compile_context>

<pallas_src>
import functools

import jax
import jax.numpy as jnp
from jax.experimental import pallas as pl
from jax.experimental.pallas import tpu as pltpu

ALPHA = 1.0
GAMMA = 2.0


def _default_block_cols() -> int:
    """Per-generation batch-tile width (lanes). Bigger HBM BW -> bigger tile."""
    try:
        kind = jax.devices()[0].device_kind.lower()
    except Exception:  # pragma: no cover - defensive; default is safe everywhere.
        return 65536
    if "v7" in kind:
        return 131072          # ~3.2 TB/s per TC: keep per-tile DMA >> 0.35 us step cost
    if "v6" in kind:
        return 131072          # ~1.4 TB/s, 128 MiB VMEM: plenty of headroom
    return 65536               # v5e (~0.82 TB/s, 16 MiB scoped default) / unknown


def _ce_partial_kernel(x_ref, t_ref, o_ref, *, n_total, blocks_per_slice):
    """One grid step: add per-sample CE of a lane-tile into the slice's (1, tn) output.

    x_ref : (C, tn) logits tile  (classes on sublanes, samples on lanes)
    t_ref : (1, tn) int32 target class per sample
    o_ref : (1, tn) f32 per-lane partial CE sums for this parallel slice (resident
            across the inner grid axis; summed in the wrapper).
    """
    p = pl.program_id(0)       # parallel slice (megacore axis)
    i = pl.program_id(1)       # sequential block within the slice

    @pl.when(i == 0)
    def _init():
        o_ref[...] = jnp.zeros_like(o_ref)

    x = x_ref[...].astype(jnp.float32)   # upcast in-kernel; bf16 stays bf16 in HBM/DMA
    t = t_ref[...]                       # (1, tn) int32
    c, tn = x.shape

    # Numerically stable log-softmax pieces, shifted by the per-sample max m.
    m = jnp.max(x, axis=0, keepdims=True)                            # (1, tn)
    s = x - m                                                        # (C, tn)
    lse_s = jnp.log(jnp.sum(jnp.exp(s), axis=0, keepdims=True))      # (1, tn) == lse - m

    # Gather s[target_j, j] via class-index compare; the shift m cancels in CE.
    cls = jax.lax.broadcasted_iota(jnp.int32, (c, tn), 0)            # class id per row
    picked_s = jnp.sum(jnp.where(cls == t, s, 0.0), axis=0, keepdims=True)   # (1, tn)

    ce = lse_s - picked_s                                            # per-sample CE

    # Mask samples past N (ragged last tile / fully out-of-range blocks of the last slice).
    col = (jax.lax.broadcasted_iota(jnp.int32, (1, tn), 1)
           + (p * blocks_per_slice + i) * tn)
    ce = jnp.where(col < n_total, ce, 0.0)

    # Item 5: elementwise per-lane accumulation; no per-step cross-lane reduce.
    o_ref[...] += ce


def focal_loss(logits: jax.Array, targets: jax.Array, *, alpha=ALPHA, gamma=GAMMA,
               block_cols=None) -> jax.Array:
    """logits: (N, C) float32/bf16, targets: (N,) int in [0, C) -> scalar float32 focal loss."""
    n, c = logits.shape

    # Lane-dense layout: batch on the 128-lane axis, classes on sublanes.  See the header
    # comment for why the transpose is kept (item 1): with C=5 the row-block layout would
    # make every vector op ~16-25x more expensive per sample and dominate everything.
    x = logits.T                                     # (C, N)   (materialized by XLA once)
    t = targets.astype(jnp.int32).reshape(1, n)      # (1, N)

    # Item 2/3: per-generation tile, multiple of 128 (or the full extent for small N).
    tn = _default_block_cols() if block_cols is None else int(block_cols)
    tn = max(128, (tn // 128) * 128)
    if n <= tn:
        tn = n                                       # single full tile (legal block shape)
    num_blocks = pl.cdiv(n, tn)

    # Item 4: leading "parallel" axis -> both TensorCores on v7x; harmless on v5e/v6e.
    n_par = 2 if num_blocks >= 2 else 1
    blocks_per_slice = pl.cdiv(num_blocks, n_par)

    # Item 6: explicit VMEM limit.  Working set per core:
    #   logits buffer  : 8 sublanes (5 padded to 8) x tn x 4 B   = 32*tn
    #   targets buffer : (1, tn) int32 pads 1 -> 8 sublanes      = 32*tn
    #   x2 inputs double-buffered                                 = 128*tn
    #   output (1, tn) f32 accumulator (budget x2)                = 64*tn
    vmem_needed = 192 * tn + (8 << 20)
    vmem_limit = int(min(48 << 20, max(32 << 20, vmem_needed)))

    kernel = functools.partial(_ce_partial_kernel, n_total=n,
                               blocks_per_slice=blocks_per_slice)

    partial = pl.pallas_call(
        kernel,
        out_shape=jax.ShapeDtypeStruct((n_par, tn), jnp.float32),
        grid=(n_par, blocks_per_slice),
        in_specs=[
            # Item 7: default 2-deep pipelining; bump to pl.Buffered(3) only if a bundle
            # dump shows exposed DMA.
            pl.BlockSpec((c, tn), lambda p, i: (0, p * blocks_per_slice + i)),
            pl.BlockSpec((1, tn), lambda p, i: (0, p * blocks_per_slice + i)),
        ],
        out_specs=pl.BlockSpec((1, tn), lambda p, i: (p, 0)),   # resident per-slice row
        compiler_params=pltpu.CompilerParams(
            dimension_semantics=("parallel", "arbitrary"),
            vmem_limit_bytes=vmem_limit,
        ),
    )(x, t)

    # Item 4: scalar finalize in the wrapper (trivial XLA ops on a handful of values).
    ce_mean = jnp.sum(partial) / jnp.float32(n)
    pt = jnp.exp(-ce_mean)
    one_minus_pt = 1.0 - pt
    if float(gamma) == 2.0:
        mod = one_minus_pt * one_minus_pt            # explicit square: no pow, NaN-free
    else:
        mod = jnp.power(jnp.maximum(one_minus_pt, 0.0), jnp.float32(gamma))
    return jnp.float32(alpha) * mod * ce_mean


def _reference(logits, targets, alpha=ALPHA, gamma=GAMMA):
    # Pure-JAX reference of the PyTorch module.
    lg = logits.astype(jnp.float32)
    lse = jax.scipy.special.logsumexp(lg, axis=-1)
    picked = jnp.take_along_axis(lg, targets.astype(jnp.int32)[:, None], axis=-1)[:, 0]
    ce = jnp.mean(lse - picked)
    pt = jnp.exp(-ce)
    return alpha * (1.0 - pt) ** gamma * ce


if __name__ == "__main__":
    key = jax.random.PRNGKey(0)
    k1, k2, k3, k4, k5, k6 = jax.random.split(key, 6)

    # Small shape consistent with the module (5 classes, per its weight tensor of length 5).
    N, C = 8, 5
    logits = jax.random.normal(k1, (N, C), dtype=jnp.float32)
    targets = jax.random.randint(k2, (N,), 0, C, dtype=jnp.int32)

    loss = focal_loss(logits, targets)
    jax.block_until_ready(loss)
    ref = _reference(logits, targets)
    assert jnp.allclose(loss, ref, rtol=1e-4, atol=1e-5), (loss, ref)

    # Multi-tile + ragged tail + parallel axis (grid (2, 2), masked overhang blocks).
    N2 = 300
    logits2 = jax.random.normal(k3, (N2, C), dtype=jnp.float32)
    targets2 = jax.random.randint(k4, (N2,), 0, C, dtype=jnp.int32)
    loss2 = focal_loss(logits2, targets2, block_cols=128)
    jax.block_until_ready(loss2)
    ref2 = _reference(logits2, targets2)
    assert jnp.allclose(loss2, ref2, rtol=1e-4, atol=1e-5), (loss2, ref2)

    # bf16 logits path (DMA'd as bf16, upcast inside the kernel).
    N3 = 256
    logits3 = jax.random.normal(k5, (N3, C), dtype=jnp.float32).astype(jnp.bfloat16)
    targets3 = jax.random.randint(k6, (N3,), 0, C, dtype=jnp.int32)
    loss3 = focal_loss(logits3, targets3, block_cols=128)
    jax.block_until_ready(loss3)
    ref3 = _reference(logits3, targets3)
    assert jnp.allclose(loss3, ref3, rtol=2e-3, atol=2e-3), (loss3, ref3)

    print("KERNEL_OK")
</pallas_src>

<mosaic_0001>
module attributes {stable_mosaic.version = 11 : i64} {
  func.func @_ce_partial_kernel(%arg0: i32, %arg1: i32, %arg2: memref<5x8xf32, #tpu.memory_space<vmem>>, %arg3: memref<1x8xi32, #tpu.memory_space<vmem>>, %arg4: memref<1x8xf32, #tpu.memory_space<vmem>>) attributes {dimension_semantics = [#tpu.dimension_semantics<parallel>, #tpu.dimension_semantics<arbitrary>], iteration_bounds = array<i64: 1, 1>, scalar_prefetch = 0 : i64, scratch_operands = 0 : i64, tpu.core_type = #tpu.core_type<tc>, window_params = [{transform_indices = @transform_0, window_bounds = array<i64: 5, 8>}, {transform_indices = @transform_1, window_bounds = array<i64: 1, 8>}, {transform_indices = @transform_2, window_bounds = array<i64: 1, 8>}]} {
    %c0_i32 = arith.constant 0 : i32
    %0 = arith.cmpi eq, %arg1, %c0_i32 : i32
    %1 = arith.extui %0 : i1 to i32
    %c0_i32_0 = arith.constant 0 : i32
    %2 = arith.cmpi ne, %1, %c0_i32_0 : i32
    scf.if %2 {
      %cst_13 = arith.constant 0.000000e+00 : f32
      %34 = vector.broadcast %cst_13 : f32 to vector<1x8xf32>
      %c0_14 = arith.constant 0 : index
      %c0_15 = arith.constant 0 : index
      %35 = vector.load %arg4[%c0_14, %c0_15] : memref<1x8xf32, #tpu.memory_space<vmem>>, vector<1x8xf32>
      tpu.vector_store %arg4[%c0_14, %c0_15], %34 {strides = array<i32>} : memref<1x8xf32, #tpu.memory_space<vmem>>, vector<1x8xf32>,
    } else {
    }
    %c0 = arith.constant 0 : index
    %c0_1 = arith.constant 0 : index
    %3 = vector.load %arg2[%c0, %c0_1] : memref<5x8xf32, #tpu.memory_space<vmem>>, vector<5x8xf32>
    %c0_2 = arith.constant 0 : index
    %c0_3 = arith.constant 0 : index
    %4 = vector.load %arg3[%c0_2, %c0_3] : memref<1x8xi32, #tpu.memory_space<vmem>>, vector<1x8xi32>
    %cst = arith.constant dense<0xFF800000> : vector<8xf32>
    %5 = vector.multi_reduction <maximumf>, %3, %cst [0] : vector<5x8xf32> to vector<8xf32>
    %6 = vector.shape_cast %5 : vector<8xf32> to vector<1x8xf32>
    %7 = vector.broadcast %6 : vector<1x8xf32> to vector<5x8xf32>
    %8 = arith.subf %3, %7 : vector<5x8xf32>
    %9 = math.exp %8 : vector<5x8xf32>
    %cst_4 = arith.constant dense<0.000000e+00> : vector<8xf32>
    %10 = vector.multi_reduction <add>, %9, %cst_4 [0] : vector<5x8xf32> to vector<8xf32>
    %11 = vector.shape_cast %10 : vector<8xf32> to vector<1x8xf32>
    %12 = math.log %11 : vector<1x8xf32>
    %13 = tpu.iota {dimensions = array<i32: 0>} : vector<5x8xi32>
    %14 = vector.broadcast %4 : vector<1x8xi32> to vector<5x8xi32>
    %15 = arith.cmpi eq, %13, %14 : vector<5x8xi32>
    %cst_5 = arith.constant 0.000000e+00 : f32
    %16 = vector.broadcast %cst_5 : f32 to vector<5x8xf32>
    %17 = arith.select %15, %8, %16 : vector<5x8xi1>, vector<5x8xf32>
    %cst_6 = arith.constant dense<0.000000e+00> : vector<8xf32>
    %18 = vector.multi_reduction <add>, %17, %cst_6 [0] : vector<5x8xf32> to vector<8xf32>
    %19 = vector.shape_cast %18 : vector<8xf32> to vector<1x8xf32>
    %20 = arith.subf %12, %19 : vector<1x8xf32>
    %21 = tpu.iota {dimensions = array<i32: 1>} : vector<1x8xi32>
    %c1_i32 = arith.constant 1 : i32
    %22 = arith.muli %arg0, %c1_i32 : i32
    %23 = arith.addi %22, %arg1 : i32
    %c8_i32 = arith.constant 8 : i32
    %24 = arith.muli %23, %c8_i32 : i32
    %25 = vector.broadcast %24 : i32 to vector<1x8xi32>
    %26 = arith.addi %21, %25 : vector<1x8xi32>
    %c8_i32_7 = arith.constant 8 : i32
    %27 = vector.broadcast %c8_i32_7 : i32 to vector<1x8xi32>
    %28 = arith.cmpi slt, %26, %27 : vector<1x8xi32>
    %cst_8 = arith.constant 0.000000e+00 : f32
    %29 = vector.broadcast %cst_8 : f32 to vector<1x8xf32>
    %30 = arith.select %28, %20, %29 : vector<1x8xi1>, vector<1x8xf32>
    %c0_9 = arith.constant 0 : index
    %c0_10 = arith.constant 0 : index
    %31 = vector.load %arg4[%c0_9, %c0_10] : memref<1x8xf32, #tpu.memory_space<vmem>>, vector<1x8xf32>
    %32 = arith.addf %31, %30 : vector<1x8xf32>
    %c0_11 = arith.constant 0 : index
    %c0_12 = arith.constant 0 : index
    %33 = vector.load %arg4[%c0_11, %c0_12] : memref<1x8xf32, #tpu.memory_space<vmem>>, vector<1x8xf32>
    tpu.vector_store %arg4[%c0_11, %c0_12], %32 {strides = array<i32>} : memref<1x8xf32, #tpu.memory_space<vmem>>, vector<1x8xf32>,
    return
  }
  func.func @transform_0(%arg0: i32, %arg1: i32) -> (i32, i32) {
    %c1_i32 = arith.constant 1 : i32
    %0 = arith.muli %arg0, %c1_i32 : i32
    %1 = arith.addi %0, %arg1 : i32
    %c0_i32 = arith.constant 0 : i32
    %c0_i32_0 = arith.constant 0 : i32
    return %c0_i32, %1 : i32, i32
  }
  func.func @transform_1(%arg0: i32, %arg1: i32) -> (i32, i32) {
    %c1_i32 = arith.constant 1 : i32
    %0 = arith.muli %arg0, %c1_i32 : i32
    %1 = arith.addi %0, %arg1 : i32
    %c0_i32 = arith.constant 0 : i32
    %c0_i32_0 = arith.constant 0 : i32
    return %c0_i32, %1 : i32, i32
  }
  func.func @transform_2(%arg0: i32, %arg1: i32) -> (i32, i32) {
    %c0_i32 = arith.constant 0 : i32
    %c0_i32_0 = arith.constant 0 : i32
    return %arg0, %c0_i32 : i32, i32
  }
}

</mosaic_0001>

<llo_original>
// kernel: tpu_custom_call.1
$region0: #{tpu_custom_call.1}
  #allocation0 [shape = 'u32[]', space=smem, size = 0x4, offset = 0x4, fixed_abs, tag = 'smem constant byte address 0x4 - core index']
  #allocation1 [shape = 'u32[144,128]{1,0:T(1,128)}', space=vmem, size = 0x12000, scoped, tag = 'internal scratch']
  %s0 = inlined_call_operand.hbm [shape: f32[5,8], index: 0, kind: input, shape index: {}]
  %s1 = inlined_call_operand.vmem [shape: s32[1,8], index: 1, kind: input, shape index: {}]
  %s2 = inlined_call_operand.hbm [shape: f32[1,8], index: 2, kind: output, shape index: {}]
  %s3 = sld [smem:[#allocation0]]
  $region26: #{tpu_custom_call.1} parent=0
    _
  %s5 = ssub.s32 1, %s3
  %s6 = scalar_select 0, %s5, %s3
  $region1: #{tpu_custom_call.1} parent=0
    #allocation2 [shape = 'u8[4096]{0}', space=vmem, size = 0x1000, scoped, tag = 'input window, operand 0, single buffered']
    #allocation3 [shape = 's32[1]{0}', space=sflag, size = 0x4, scoped, tag = 'scoped memory for tpu_custom_call.1']
    #allocation4 [shape = 's32[1]{0}', space=sflag, size = 0x4, scoped, tag = 'scoped memory for tpu_custom_call.1']
    #allocation5 [shape = 'u8[512]{0}', space=vmem, size = 0x400, scoped, tag = 'output window, operand 0, single buffered']
    %7 = vsyncpa [#allocation3], 0
    %8 = vsyncpa [#allocation4], 0
    // Predicated region
    $region2: #{tpu_custom_call.1} parent=1 // pred_check
      _
    $region3: #{tpu_custom_call.1} parent=1 // pred_check_branch
      %10 = sbr.rel (0) target = $region5
    $region4: #{tpu_custom_call.1} parent=1 // pred_region
      %s11 = sadd.s32 0, 0
      %s13 = ssub.s32 128, 128
      %14 = vsyncadd [#allocation3], %s13
      %s15 = smul.addr %s11, 128
      %s16 = scalar_lea.hbm %s0, %s15
      %s18 = sshll.u32 [#allocation2], 4
      %s19 = int_to_ptr.vmem [resolvable:$true] %s18
      %21 = dma.hbm_to_vmem [thread:$0]  %s16, 128, %s19, [#allocation3]
    $region5: #{tpu_custom_call.1} parent=1 // pred_fallthru
      _
    // Predicated region
    $region6: #{tpu_custom_call.1} parent=1 // pred_check
      _
    $region7: #{tpu_custom_call.1} parent=1 // pred_check_branch
      %23 = sbr.rel (0) target = $region9
    $region8: #{tpu_custom_call.1} parent=1 // pred_region
      %s24 = sadd.s32 0, 0
      %p25 = scmp.lt.s32.totalorder %s24, 0
      %s26 = scalar_select %p25, %s24, 0
      %s27 = scalar_lea.vmem %s1, %s26
      %s28 = sadd.s32 0, 0
    $region9: #{tpu_custom_call.1} parent=1 // pred_fallthru
      _
    // Predicated region
    $region10: #{tpu_custom_call.1} parent=1 // pred_check
      _
    $region11: #{tpu_custom_call.1} parent=1 // pred_check_branch
      %30 = sbr.rel (0) target = $region13
    $region12: #{tpu_custom_call.1} parent=1 // pred_region
      %31 = dma.done [#allocation3], 128
    $region13: #{tpu_custom_call.1} parent=1 // pred_fallthru
      _
    %s32 = sadd.s32 0, 0
    %p33 = scmp.lt.s32.totalorder %s32, 0
    %s34 = scalar_select %p33, %s32, 0
    %s35 = scalar_lea.vmem %s1, %s34
    %s36 = sadd.s32 0, 0
    %s37 = sadd.s32 0, 0
    %p38 = scmp.lt.s32.totalorder %s37, 0
    %s39 = scalar_select %p38, %s37, 0
    %s40 = scalar_lea.vmem %s1, %s39
    %s41 = sadd.s32 0, 0
    %p42 = scmp.eq.s32.totalorder 0, 0
    // Predicated region
    $region14: #{tpu_custom_call.1} parent=1 // pred_check
      %p43 = pneg %p42
    $region15: #{tpu_custom_call.1} parent=1 // pred_check_branch
      %45 = sbr.rel (%p43) target = $region17
    $region16: #{tpu_custom_call.1} parent=1 // pred_region
      %vm46 = vcmask 57344
      %47 = vst.msk [vmem:[#allocation5] sm:$0x1] %vm46, 0.0
    $region17: #{tpu_custom_call.1} parent=1 // pred_fallthru
      _
    %v48 = vld [vmem:[#allocation2] sm:$0x1f]
    %v49 = vld [vmem:[%s40] sm:$0x1]
    %vm50 = vcmask 61440
    %v51 = vsel %vm50, %v48, -inf
    %v52 = vrot.slane %v51, 4
    %v53 = vmax.f32 %v51, %v52
    %v54 = vrot.slane %v53, 2
    %v55 = vmax.f32 %v53, %v54
    %v56 = vrot.slane %v55, 1
    %v57 = vmax.f32 %v55, %v56
    %v58 = vsub.f32 %v48, %v57
    %v59 = vmul.f32 %v58, 1.442695
    %v60 = vpow.pop %v59
    %v61 = vsel %vm50, %v60, 0.0
    %v62 = vrot.slane %v61, 4
    %v63 = vadd.f32 %v61, %v62
    %v64 = vrot.slane %v63, 2
    %v65 = vadd.f32 %v63, %v64
    %v66 = vrot.slane %v65, 1
    %v67 = vadd.f32 %v65, %v66
    %v68 = vlog2.pop %v67
    %v69 = vmul.f32 %v68, 0.6931472
    %v70 = vlaneseq
    %v71 = vshrl.u32 %v70, 7
    %v72 = vlaneseq
    %v73 = vshrl.u32 %v72, 7
    %v74 = vsub.s32 0, %v73
    %v75 = vrot.slane %v49, %v74
    %vm76 = vcmp.eq.s32.totalorder %v71, %v75
    %v77 = vsel %vm76, %v58, 0.0
    %v78 = vsel %vm50, %v77, 0.0
    %v79 = vrot.slane %v78, 4
    %v80 = vadd.f32 %v78, %v79
    %v81 = vrot.slane %v80, 2
    %v82 = vadd.f32 %v80, %v81
    %v83 = vrot.slane %v82, 1
    %v84 = vadd.f32 %v82, %v83
    %v85 = vsub.f32 %v69, %v84
    %v86 = vlaneseq
    %v87 = vand.u32 %v86, 127
    %s88 = sadd.s32 0, 0
    %s89 = smul.u32 %s88, 8
    %v90 = vstv %s89
    %v91 = vadd.s32 %v87, %v90
    %vm92 = vcmp.lt.s32.totalorder %v91, 8
    %v93 = vsel %vm92, %v85, 0.0
    %v94 = vld [vmem:[#allocation5] sm:$0x1]
    %v95 = vadd.f32 %v94, %v93
    %vm96 = vcmask 57344
    %97 = vst.msk [vmem:[#allocation5] sm:$0x1] %vm96, %v95
    // Predicated region
    $region18: #{tpu_custom_call.1} parent=1 // pred_check
      _
    $region19: #{tpu_custom_call.1} parent=1 // pred_check_branch
      %99 = sbr.rel (0) target = $region21
    $region20: #{tpu_custom_call.1} parent=1 // pred_region
      %s101 = ssub.s32 16, 16
      %102 = vsyncadd [#allocation4], %s101
      %s104 = sshll.u32 [#allocation5], 4
      %s105 = int_to_ptr.vmem [resolvable:$true] %s104
      %107 = dma.vmem_to_hbm [thread:$0]  %s105, 16, %s2, [#allocation4]
    $region21: #{tpu_custom_call.1} parent=1 // pred_fallthru
      _
    // Predicated region
    $region22: #{tpu_custom_call.1} parent=1 // pred_check
      _
    $region23: #{tpu_custom_call.1} parent=1 // pred_check_branch
      %109 = sbr.rel (0) target = $region25
    $region24: #{tpu_custom_call.1} parent=1 // pred_region
      %110 = dma.done [#allocation4], 16
    $region25: #{tpu_custom_call.1} parent=1 // pred_fallthru
      _
    %111 = vsyncpa [#allocation3], 1
    %112 = vsyncpa [#allocation4], 1

</llo_original>
